<compile_context>
chip_gen: v7x
topology: tpu7x:2x2x1
jax: 0.10.0
libtpu: 0.0.40
codegen_flags: <defaults>
</compile_context>

<pallas_src>
import functools

import jax
import jax.numpy as jnp
from jax import lax
from jax.experimental import pallas as pl
from jax.experimental.pallas import tpu as pltpu

EPS = 1e-5
NEG_SLOPE = 0.01  # PyTorch LeakyReLU default


# ----------------------------------------------------------------------------
# Small helpers.
# ----------------------------------------------------------------------------
def _full_spec(shape):
    n = len(shape)
    return pl.BlockSpec(shape, lambda: (0,) * n)


def _mod_const(v, m):
    if m & (m - 1) == 0:
        return jnp.bitwise_and(v, m - 1)
    # TODO(synk): non-pow2 W/H falls back to vector int remainder.
    return v % m


def _div_const(v, d):
    if d & (d - 1) == 0:
        return jnp.right_shift(v, d.bit_length() - 1)
    return v // d


def _probe_roll_kernel(x_ref, o_ref):
    o_ref[...] = pltpu.roll(x_ref[...], shift=1, axis=1)


@functools.lru_cache(maxsize=None)
def _roll_matches_jnp():
    """One-time probe: True iff pltpu.roll(x, s) == jnp.roll(x, s).

    jnp.roll convention: out[i] = x[(i - shift) % n], so roll(x, 1)[0] == x[-1].
    """
    x = jnp.tile(jnp.arange(128, dtype=jnp.float32)[None, :], (8, 1))
    y = pl.pallas_call(
        _probe_roll_kernel,
        out_shape=jax.ShapeDtypeStruct((8, 128), jnp.float32),
        in_specs=[_full_spec((8, 128))],
        out_specs=_full_spec((8, 128)),
    )(x)
    return bool(float(y[0, 0]) == 127.0)


# ----------------------------------------------------------------------------
# In-kernel helper: training-mode BatchNorm (centered two-pass) + LeakyReLU.
#
# z: (R, M).  gamma/beta are already laid out per row ((R, 1)).  When `fold`
# is given (a constant 0/1 matrix with fold[r, s] = 1 iff rows r and s hold
# the same channel), per-channel statistics are folded across the phase
# row-groups via a tiny matmul (MXU slack) instead of sublane shuffles.
# ----------------------------------------------------------------------------
def _bn_lrelu(z, gamma, beta, inv_n, fold=None):
    zf = z if fold is None else jnp.dot(
        fold, z, preferred_element_type=jnp.float32)
    mean = jnp.sum(zf, axis=1, keepdims=True) * inv_n          # (R, 1)
    d = z - mean
    dsq = d * d
    if fold is not None:
        dsq = jnp.dot(fold, dsq, preferred_element_type=jnp.float32)
    var = jnp.sum(dsq, axis=1, keepdims=True) * inv_n          # (R, 1)
    y = d * (gamma * lax.rsqrt(var + EPS)) + beta
    return jnp.where(y > 0, y, NEG_SLOPE * y)


# ----------------------------------------------------------------------------
# Fused Pallas kernel: conv1 -> deconv2 (4 sub-pixel phases) -> conv3.
#   x_ref      : (N, Cin, H*W) f32
#   w2_ref     : (4 taps, 4*Cmid, Cmid)   phase-major output rows per tap
#   w3_ref     : (4*Cout, 4*Cmid)         block-diagonal over phases
#   p2/p3_ref  : constant fold matrices for grouped BN stats
#   o_ref      : (4*Cout, N*H*W)          phase-major rows, lane-dense
# ----------------------------------------------------------------------------
def decoder_block0_kernel(x_ref, w1_ref, g1_ref, b1_ref,
                          w2_ref, g2_ref, b2_ref, p2_ref,
                          w3_ref, g3_ref, b3_ref, p3_ref,
                          o_ref, *, wimg, himg, shifts):
    nbatch, _, hw = x_ref.shape
    m1 = nbatch * hw

    # ---- stage 1: 1x1 conv + BN(train) + LeakyReLU --------------------------
    # (conv bias omitted: exactly cancelled by training-mode BN mean
    #  subtraction; not valid if eval-mode running stats are ever used.)
    w1 = w1_ref[...]
    z1 = jnp.concatenate(
        [jnp.dot(w1, x_ref[n], preferred_element_type=jnp.float32)
         for n in range(nbatch)], axis=1)                       # (Cmid, M1)
    y1 = _bn_lrelu(z1, g1_ref[...], b1_ref[...], 1.0 / float(m1))

    # ---- boundary masks from in-kernel iota (no HBM mask traffic) -----------
    pos = lax.broadcasted_iota(jnp.int32, (1, m1), 1)
    col = _mod_const(pos, wimg)                                 # b
    row = _mod_const(_div_const(pos, wimg), himg)               # a
    mask_w = (col != wimg - 1).astype(jnp.float32)              # 0 at b == W-1
    mask_h = (row != himg - 1).astype(jnp.float32)              # 0 at a == H-1

    # ---- stage 2: ConvTranspose2d(3x3, s2, p1, op1) via 4 sub-pixel phases --
    # Shifted neighbours via XLU roll in registers (no VMEM staging).
    s_w, s_h, s_hw = shifts
    y1_w = pltpu.roll(y1, shift=s_w, axis=1) * mask_w           # y1[a, b+1]
    y1_h = pltpu.roll(y1, shift=s_h, axis=1) * mask_h           # y1[a+1, b]
    y1_hw = pltpu.roll(y1, shift=s_hw, axis=1) * (mask_w * mask_h)

    # Phase-packed rows (p*Cmid + c): one small matmul per tap, summed.
    z2 = (jnp.dot(w2_ref[0], y1, preferred_element_type=jnp.float32)
          + jnp.dot(w2_ref[1], y1_w, preferred_element_type=jnp.float32)
          + jnp.dot(w2_ref[2], y1_h, preferred_element_type=jnp.float32)
          + jnp.dot(w2_ref[3], y1_hw, preferred_element_type=jnp.float32))
    y2 = _bn_lrelu(z2, g2_ref[...], b2_ref[...], 1.0 / float(4 * m1),
                   fold=p2_ref[...])                            # (4*Cmid, M1)

    # ---- stage 3: 1x1 conv (block-diag over phases) + BN + LeakyReLU --------
    z3 = jnp.dot(w3_ref[...], y2, preferred_element_type=jnp.float32)
    o_ref[...] = _bn_lrelu(z3, g3_ref[...], b3_ref[...], 1.0 / float(4 * m1),
                           fold=p3_ref[...]).astype(o_ref.dtype)


# ----------------------------------------------------------------------------
# Parameter construction (deterministic, PyTorch-shaped).
# ----------------------------------------------------------------------------
def _deconv_phase_weights(w_t):
    """w_t: ConvTranspose2d weight (Cin, Cout, 3, 3) -> (4, Cout, 4*Cin).

    Phase p = 2*ph + pw; operand row blocks (taps) are
      [y1(a,b) ; y1(a,b+1) ; y1(a+1,b) ; y1(a+1,b+1)].
    """
    T = lambda kh, kw: jnp.transpose(w_t[:, :, kh, kw])   # (Cout, Cin)
    Z = jnp.zeros_like(T(0, 0))
    p00 = jnp.concatenate([T(1, 1), Z,       Z,       Z      ], axis=1)
    p01 = jnp.concatenate([T(1, 2), T(1, 0), Z,       Z      ], axis=1)
    p10 = jnp.concatenate([T(2, 1), Z,       T(0, 1), Z      ], axis=1)
    p11 = jnp.concatenate([T(2, 2), T(2, 0), T(0, 2), T(0, 0)], axis=1)
    return jnp.stack([p00, p01, p10, p11], axis=0)


def init_params(key, in_channels, out_channels):
    mid = in_channels // 2
    k1, k2, k3, k4, k5, k6 = jax.random.split(key, 6)
    w1 = 0.1 * jax.random.normal(k1, (mid, in_channels), jnp.float32)  # (o, i)
    b1 = 0.1 * jax.random.normal(k2, (mid,), jnp.float32)
    w2_t = 0.1 * jax.random.normal(k3, (mid, mid, 3, 3), jnp.float32)  # (i, o, kh, kw)
    b2 = 0.1 * jax.random.normal(k4, (mid,), jnp.float32)
    w3 = 0.1 * jax.random.normal(k5, (out_channels, mid), jnp.float32)  # (o, i)
    b3 = 0.1 * jax.random.normal(k6, (out_channels,), jnp.float32)

    w2p = _deconv_phase_weights(w2_t)                 # (4, mid, 4*mid) phase-major
    w2_taps = (w2p.reshape(4, mid, 4, mid)            # [p, c, tap, i]
               .transpose(2, 0, 1, 3)                 # [tap, p, c, i]
               .reshape(4, 4 * mid, mid))             # [tap, p*mid + c, i]
    w3_block = jnp.kron(jnp.eye(4, dtype=jnp.float32), w3)  # (4*out, 4*mid)

    return dict(
        w1=w1, b1=b1, g1=jnp.ones((mid,), jnp.float32),
        bt1=jnp.zeros((mid,), jnp.float32),
        w2_t=w2_t, w2_taps=w2_taps, b2=b2,
        g2=jnp.ones((mid,), jnp.float32), bt2=jnp.zeros((mid,), jnp.float32),
        w3=w3, w3_block=w3_block, b3=b3,
        g3=jnp.ones((out_channels,), jnp.float32),
        bt3=jnp.zeros((out_channels,), jnp.float32),
    )


# ----------------------------------------------------------------------------
# Forward pass: NCHW in / NCHW out, hot path in a single fused Pallas call.
# ----------------------------------------------------------------------------
def _fold_matrix(c):
    """(4c, 4c) 0/1 matrix: fold[r, s] = 1 iff rows r, s hold the same channel."""
    r = jnp.arange(4 * c, dtype=jnp.int32)
    return (r[:, None] % c == r[None, :] % c).astype(jnp.float32)


@functools.partial(jax.jit, static_argnames=("roll_fwd",))
def _decoder_block0_jit(x_nchw, params, roll_fwd):
    N, Cin, H, W = x_nchw.shape
    Cmid = params["w1"].shape[0]
    Cout = params["w3"].shape[0]
    m1 = N * H * W

    # Free reshape (no HBM transpose): kernel consumes (N, Cin, H*W).
    x_r = x_nchw.reshape(N, Cin, H * W).astype(jnp.float32)

    # Content shifts wanted: +1 (b+1), +W (a+1), +W+1.  Convert to the probed
    # pltpu.roll convention; jnp.roll convention needs shift = (-k) % m1.
    if roll_fwd:
        shifts = tuple(int((-k) % m1) for k in (1, W, W + 1))
    else:
        shifts = tuple(int(k % m1) for k in (1, W, W + 1))

    g1 = params["g1"].reshape(Cmid, 1)
    bt1 = params["bt1"].reshape(Cmid, 1)
    # gamma/beta pre-tiled to the phase-major row layout (p*C + c).
    g2 = jnp.tile(params["g2"].reshape(Cmid, 1), (4, 1))
    bt2 = jnp.tile(params["bt2"].reshape(Cmid, 1), (4, 1))
    g3 = jnp.tile(params["g3"].reshape(Cout, 1), (4, 1))
    bt3 = jnp.tile(params["bt3"].reshape(Cout, 1), (4, 1))

    args = (x_r,
            params["w1"], g1, bt1,
            params["w2_taps"], g2, bt2, _fold_matrix(Cmid),
            params["w3_block"], g3, bt3, _fold_matrix(Cout))

    # Rough f32 footprint (input + intermediates + output, double-buffered),
    # with headroom; capped below v7x's 64 MiB physical VMEM.
    est_bytes = 4 * m1 * (2 * Cin + 8 * Cmid + 16 * (Cmid + Cout)) + (4 << 20)
    vmem_limit = int(min(48 << 20, max(est_bytes, 16 << 20)))

    out_flat = pl.pallas_call(
        functools.partial(decoder_block0_kernel, wimg=W, himg=H, shifts=shifts),
        out_shape=jax.ShapeDtypeStruct((4 * Cout, m1), jnp.float32),
        in_specs=[_full_spec(a.shape) for a in args],
        out_specs=_full_spec((4 * Cout, m1)),
        compiler_params=pltpu.CompilerParams(vmem_limit_bytes=vmem_limit),
    )(*args)

    # De-interleave the phase-packed rows into NCHW.
    # TODO(synk): keep the phase-blocked layout for the consumer instead of
    #             paying this extra HBM round trip of the largest tensor.
    o = out_flat.reshape(2, 2, Cout, N, H, W)          # (ph, pw, c, n, a, b)
    o = jnp.transpose(o, (3, 2, 4, 0, 5, 1))           # (n, c, a, ph, b, pw)
    return o.reshape(N, Cout, 2 * H, 2 * W)


def decoder_block0(x_nchw, params):
    return _decoder_block0_jit(x_nchw, params, roll_fwd=_roll_matches_jnp())


# ----------------------------------------------------------------------------
# Independent pure-JAX reference (XLA conv path, includes the conv biases).
# ----------------------------------------------------------------------------
def _bn_lrelu_nchw(y, gamma, beta):
    mean = jnp.mean(y, axis=(0, 2, 3), keepdims=True)
    var = jnp.mean((y - mean) ** 2, axis=(0, 2, 3), keepdims=True)
    y = (y - mean) * lax.rsqrt(var + EPS)
    y = y * gamma[None, :, None, None] + beta[None, :, None, None]
    return jnp.where(y > 0, y, NEG_SLOPE * y)


def decoder_block0_ref(x_nchw, params):
    x = x_nchw.astype(jnp.float32)
    # conv1 (1x1) + bias + BN + LeakyReLU
    y = jnp.einsum("oi,nihw->nohw", params["w1"], x)
    y = y + params["b1"][None, :, None, None]
    y = _bn_lrelu_nchw(y, params["g1"], params["bt1"])
    # ConvTranspose2d(3, stride=2, padding=1, output_padding=1) + bias + BN + LReLU
    w_t = params["w2_t"]                                        # (Cin, Cout, 3, 3)
    w_eq = jnp.flip(w_t, axis=(2, 3)).transpose(1, 0, 2, 3)     # OIHW
    y = lax.conv_general_dilated(
        y, w_eq, window_strides=(1, 1), padding=((1, 2), (1, 2)),
        lhs_dilation=(2, 2), rhs_dilation=(1, 1),
        dimension_numbers=("NCHW", "OIHW", "NCHW"))
    y = y + params["b2"][None, :, None, None]
    y = _bn_lrelu_nchw(y, params["g2"], params["bt2"])
    # conv3 (1x1) + bias + BN + LeakyReLU
    y = jnp.einsum("oi,nihw->nohw", params["w3"], y)
    y = y + params["b3"][None, :, None, None]
    y = _bn_lrelu_nchw(y, params["g3"], params["bt3"])
    return y


# ----------------------------------------------------------------------------
if __name__ == "__main__":
    in_channels, out_channels = 8, 4
    N, H, W = 2, 16, 16

    key = jax.random.PRNGKey(0)
    kx, kp = jax.random.split(key)
    x = jax.random.normal(kx, (N, in_channels, H, W), jnp.float32)  # NCHW
    params = init_params(kp, in_channels, out_channels)

    out = jax.block_until_ready(decoder_block0(x, params))
    assert out.shape == (N, out_channels, 2 * H, 2 * W), out.shape

    ref = jax.block_until_ready(decoder_block0_ref(x, params))
    max_err = float(jnp.max(jnp.abs(out - ref)))
    assert jnp.allclose(out, ref, atol=1e-3, rtol=1e-3), max_err

    print("KERNEL_OK")
</pallas_src>

<mosaic_0001>
module attributes {stable_mosaic.version = 11 : i64} {
  func.func @_probe_roll_kernel(%arg0: memref<8x128xf32, #tpu.memory_space<vmem>>, %arg1: memref<8x128xf32, #tpu.memory_space<vmem>>) attributes {dimension_semantics = [], scalar_prefetch = 0 : i64, scratch_operands = 0 : i64, tpu.core_type = #tpu.core_type<tc>} {
    %c0 = arith.constant 0 : index
    %c0_0 = arith.constant 0 : index
    %0 = vector.load %arg0[%c0, %c0_0] : memref<8x128xf32, #tpu.memory_space<vmem>>, vector<8x128xf32>
    %c1_i32 = arith.constant 1 : i32
    %1 = tpu.dynamic_rotate %0 by %c1_i32 dim 1 : vector<8x128xf32>, i32 -> vector<8x128xf32>
    %c0_1 = arith.constant 0 : index
    %c0_2 = arith.constant 0 : index
    %2 = vector.load %arg1[%c0_1, %c0_2] : memref<8x128xf32, #tpu.memory_space<vmem>>, vector<8x128xf32>
    tpu.vector_store %arg1[%c0_1, %c0_2], %1 {strides = array<i32>} : memref<8x128xf32, #tpu.memory_space<vmem>>, vector<8x128xf32>,
    return
  }
}

</mosaic_0001>

<llo_original>
// kernel: tpu_custom_call.1
$region0: #{tpu_custom_call.1}
  #allocation0 [shape = 'u32[]', space=smem, size = 0x4, offset = 0x4, fixed_abs, tag = 'smem constant byte address 0x4 - core index']
  #allocation1 [shape = 'u32[144,128]{1,0:T(1,128)}', space=vmem, size = 0x12000, scoped, tag = 'internal scratch']
  %s0 = inlined_call_operand.hbm [shape: f32[8,128], index: 0, kind: input, shape index: {}]
  %s1 = inlined_call_operand.hbm [shape: f32[8,128], index: 1, kind: output, shape index: {}]
  %s2 = sld [smem:[#allocation0]]
  $region18: #{tpu_custom_call.1} parent=0
    _
  %s4 = ssub.s32 1, %s2
  %s5 = scalar_select 0, %s4, %s2
  $region1: #{tpu_custom_call.1} parent=0
    #allocation2 [shape = 'u8[4096]{0}', space=vmem, size = 0x1000, scoped, tag = 'input window, operand 0, single buffered']
    #allocation3 [shape = 's32[1]{0}', space=sflag, size = 0x4, scoped, tag = 'scoped memory for tpu_custom_call.1']
    #allocation4 [shape = 's32[1]{0}', space=sflag, size = 0x4, scoped, tag = 'scoped memory for tpu_custom_call.1']
    #allocation5 [shape = 'u8[4096]{0}', space=vmem, size = 0x1000, scoped, tag = 'output window, operand 0, single buffered']
    %6 = vsyncpa [#allocation3], 0
    %7 = vsyncpa [#allocation4], 0
    // Predicated region
    $region2: #{tpu_custom_call.1} parent=1 // pred_check
      _
    $region3: #{tpu_custom_call.1} parent=1 // pred_check_branch
      %9 = sbr.rel (0) target = $region5
    $region4: #{tpu_custom_call.1} parent=1 // pred_region
      %s11 = ssub.s32 128, 128
      %12 = vsyncadd [#allocation3], %s11
      %s14 = sshll.u32 [#allocation2], 4
      %s15 = int_to_ptr.vmem [resolvable:$true] %s14
      %17 = dma.hbm_to_vmem [thread:$0]  %s0, 128, %s15, [#allocation3]
    $region5: #{tpu_custom_call.1} parent=1 // pred_fallthru
      _
    // Predicated region
    $region6: #{tpu_custom_call.1} parent=1 // pred_check
      _
    $region7: #{tpu_custom_call.1} parent=1 // pred_check_branch
      %19 = sbr.rel (0) target = $region9
    $region8: #{tpu_custom_call.1} parent=1 // pred_region
      %20 = dma.done [#allocation3], 128
    $region9: #{tpu_custom_call.1} parent=1 // pred_fallthru
      _
    %v21 = vld [vmem:[#allocation2] sm:$0xff]
    %22 = vrot.lane.b32.xlu0 %v21, 1
    %v23 = vpop.permute.xlu0 %22
    %24 = vst [vmem:[#allocation5] sm:$0xff] %v23
    // Predicated region
    $region10: #{tpu_custom_call.1} parent=1 // pred_check
      _
    $region11: #{tpu_custom_call.1} parent=1 // pred_check_branch
      %26 = sbr.rel (0) target = $region13
    $region12: #{tpu_custom_call.1} parent=1 // pred_region
      %s28 = ssub.s32 128, 128
      %29 = vsyncadd [#allocation4], %s28
      %s31 = sshll.u32 [#allocation5], 4
      %s32 = int_to_ptr.vmem [resolvable:$true] %s31
      %34 = dma.vmem_to_hbm [thread:$0]  %s32, 128, %s1, [#allocation4]
    $region13: #{tpu_custom_call.1} parent=1 // pred_fallthru
      _
    // Predicated region
    $region14: #{tpu_custom_call.1} parent=1 // pred_check
      _
    $region15: #{tpu_custom_call.1} parent=1 // pred_check_branch
      %36 = sbr.rel (0) target = $region17
    $region16: #{tpu_custom_call.1} parent=1 // pred_region
      %37 = dma.done [#allocation4], 128
    $region17: #{tpu_custom_call.1} parent=1 // pred_fallthru
      _
    %38 = vsyncpa [#allocation3], 1
    %39 = vsyncpa [#allocation4], 1

</llo_original>
